<compile_context>
chip_gen: v6e
topology: v6e:2x2x1
jax: 0.10.0
libtpu: 0.0.40
codegen_flags: <defaults>
</compile_context>

<pallas_src>
import functools

import jax
import jax.numpy as jnp
from jax.experimental import pallas as pl
from jax.experimental.pallas import tpu as pltpu

# --------------------- model hyper-parameters (small, consistent) -------------------
INPUT_DIM = 64      # EEG feature vector length
HIDDEN_DIM = 32
OUTPUT_DIM = 5      # number of classes

SUBLANE = 8


def _round_up(x, m):
    return (x + m - 1) // m * m


# ----------------------------------- Pallas kernel ----------------------------------
def mlp_kernel(x_ref, w1_ref, b1_ref, w2_ref, b2_ref, o_ref):
    # fc1 + ReLU: (Bt, D) @ (D, H) -> (Bt, H) on the MXU with f32 accumulation.
    h = jnp.dot(x_ref[...], w1_ref[...], preferred_element_type=jnp.float32)
    h = jnp.maximum(h + b1_ref[...], 0.0)              # bias + ReLU stay in f32 (VPU)
    # fc2 at the true class width: (Bt, H) @ (H, NC) -> (Bt, NC).  Writing only NC
    # columns keeps the HBM writeback ~25x smaller than a 128-lane-padded slab.
    h = h.astype(w2_ref.dtype)                         # native bf16 MXU when streaming bf16
    o_ref[...] = (jnp.dot(h, w2_ref[...], preferred_element_type=jnp.float32)
                  + b2_ref[...])


# -------------------------------- parameter setup (glue) ----------------------------
def init_params(key):
    """PyTorch nn.Linear layout: weight (out_features, in_features), bias (out_features,)."""
    k1, k2, k3, k4 = jax.random.split(key, 4)
    return {
        'w1': 0.20 * jax.random.normal(k1, (HIDDEN_DIM, INPUT_DIM), jnp.float32),
        'b1': 0.10 * jax.random.normal(k2, (HIDDEN_DIM,), jnp.float32),
        'w2': 0.20 * jax.random.normal(k3, (OUTPUT_DIM, HIDDEN_DIM), jnp.float32),
        'b2': 0.10 * jax.random.normal(k4, (OUTPUT_DIM,), jnp.float32),
    }


def prepare_params(params, *, stream_dtype=jnp.float32):
    """One-time weight prep, hoisted out of the per-call forward path.

    Transposes to (in, out) so both layers lower to plain x @ W MXU matmuls.
    stream_dtype=jnp.bfloat16 halves the weight streams and makes the matmuls
    native bf16 when the activations are bf16; biases stay f32 so the bias-add
    and ReLU run in f32 on every TPU generation.
    """
    return {
        'w1t': params['w1'].T.astype(stream_dtype),               # (D, H)
        'b1':  params['b1'].reshape(1, -1).astype(jnp.float32),   # (1, H)  f32 on purpose
        'w2t': params['w2'].T.astype(stream_dtype),               # (H, NC)
        'b2':  params['b2'].reshape(1, -1).astype(jnp.float32),   # (1, NC) f32 on purpose
    }


# -------------------------------------- wrapper --------------------------------------
@functools.partial(jax.jit, static_argnames=('batch_tile',))
def eeg_classifier_forward(x, prep, *, batch_tile=1024):
    """x: (B, input_dim) array (f32 or bf16) -> (B, output_dim) f32 logits."""
    B, D = x.shape
    H = prep['w1t'].shape[1]
    NC = prep['w2t'].shape[1]

    # Sublane alignment for the batch tile: 8 rows for 32-bit dtypes, 16 for bf16.
    itemsize = jnp.dtype(x.dtype).itemsize
    align = SUBLANE * max(1, 4 // itemsize)

    # Batch tile: large (amortizes per-step pipeline overhead; >=512 rows gets
    # ~85%+ of the HBM roofline), capped at ceil(B/2) so there are always >= 2
    # grid steps for v7x's two TensorCores, and rounded to the sublane multiple.
    bt = min(batch_tile, max(B, 1))
    if B >= 2 * align:
        bt = min(bt, -(-B // 2))
    if bt < B:
        bt = _round_up(bt, align)       # tiled case: sublane-aligned tile
    # else bt == B: a single full-batch block (always a legal block shape)

    grid = (pl.cdiv(B, bt),)            # ragged tail handled by bounds-checked block DMA

    return pl.pallas_call(
        mlp_kernel,
        grid=grid,
        in_specs=[
            pl.BlockSpec((bt, D), lambda i: (i, 0)),     # x batch tile (streamed)
            pl.BlockSpec((D, H), lambda i: (0, 0)),      # fc1 weight (resident)
            pl.BlockSpec((1, H), lambda i: (0, 0)),      # fc1 bias   (resident)
            pl.BlockSpec((H, NC), lambda i: (0, 0)),     # fc2 weight (resident)
            pl.BlockSpec((1, NC), lambda i: (0, 0)),     # fc2 bias   (resident)
        ],
        out_specs=pl.BlockSpec((bt, NC), lambda i: (i, 0)),
        out_shape=jax.ShapeDtypeStruct((B, NC), jnp.float32),   # exact logits, no pad/slice
        compiler_params=pltpu.CompilerParams(
            dimension_semantics=("parallel",)),          # batch axis -> 2 TCs on v7x
    )(x, prep['w1t'], prep['b1'], prep['w2t'], prep['b2'])


# --------------------------- pure-JAX reference (for checking) -----------------------
def reference_forward(x, p):
    h = jnp.maximum(x @ p['w1'].T + p['b1'][None, :], 0.0)
    return h @ p['w2'].T + p['b2'][None, :]


if __name__ == "__main__":
    key = jax.random.PRNGKey(0)
    pkey, xkey = jax.random.split(key)
    params = init_params(pkey)
    prep = prepare_params(params)                        # f32 streams

    # -- check 1: tiny batch (B=2), f32 streams --
    x_small = jax.random.normal(xkey, (2, INPUT_DIM), jnp.float32)
    out_small = jax.block_until_ready(eeg_classifier_forward(x_small, prep))
    ref_small = reference_forward(x_small, params)
    assert out_small.shape == (2, OUTPUT_DIM), out_small.shape
    if not jnp.allclose(out_small, ref_small, rtol=1e-4, atol=1e-4):
        raise AssertionError(
            f"f32 small-batch mismatch: {jnp.max(jnp.abs(out_small - ref_small))}")

    # -- check 2: ragged multi-tile batch (B=1000 -> 2 grid steps), f32 streams --
    x_big = jax.random.normal(jax.random.PRNGKey(1), (1000, INPUT_DIM), jnp.float32)
    out_big = jax.block_until_ready(
        eeg_classifier_forward(x_big, prep, batch_tile=512))
    ref_big = reference_forward(x_big, params)
    if not jnp.allclose(out_big, ref_big, rtol=1e-4, atol=1e-4):
        raise AssertionError(
            f"f32 ragged-batch mismatch: {jnp.max(jnp.abs(out_big - ref_big))}")

    # -- check 3: bf16 input/weight streams (half the HBM bytes), f32 accumulate --
    prep_bf16 = prepare_params(params, stream_dtype=jnp.bfloat16)
    out_bf16 = jax.block_until_ready(
        eeg_classifier_forward(x_big.astype(jnp.bfloat16), prep_bf16))
    if not jnp.allclose(out_bf16, ref_big, rtol=1e-1, atol=2e-1):   # input-quantization drift
        raise AssertionError(
            f"bf16 stream drift too large: {jnp.max(jnp.abs(out_bf16 - ref_big))}")

    print("KERNEL_OK")
</pallas_src>

<mosaic_0001>
module attributes {stable_mosaic.version = 11 : i64} {
  func.func @mlp_kernel(%arg0: i32, %arg1: memref<2x64xf32, #tpu.memory_space<vmem>>, %arg2: memref<64x32xf32, #tpu.memory_space<vmem>>, %arg3: memref<1x32xf32, #tpu.memory_space<vmem>>, %arg4: memref<32x5xf32, #tpu.memory_space<vmem>>, %arg5: memref<1x5xf32, #tpu.memory_space<vmem>>, %arg6: memref<2x5xf32, #tpu.memory_space<vmem>>) attributes {dimension_semantics = [#tpu.dimension_semantics<parallel>], iteration_bounds = array<i64: 1>, scalar_prefetch = 0 : i64, scratch_operands = 0 : i64, tpu.core_type = #tpu.core_type<tc>, window_params = [{transform_indices = @transform_0, window_bounds = array<i64: 2, 64>}, {pipeline_mode = #tpu.pipeline_mode<synchronous>, transform_indices = @transform_1, window_bounds = array<i64: 64, 32>}, {pipeline_mode = #tpu.pipeline_mode<synchronous>, transform_indices = @transform_2, window_bounds = array<i64: 1, 32>}, {pipeline_mode = #tpu.pipeline_mode<synchronous>, transform_indices = @transform_3, window_bounds = array<i64: 32, 5>}, {pipeline_mode = #tpu.pipeline_mode<synchronous>, transform_indices = @transform_4, window_bounds = array<i64: 1, 5>}, {transform_indices = @transform_5, window_bounds = array<i64: 2, 5>}]} {
    %c0 = arith.constant 0 : index
    %c0_0 = arith.constant 0 : index
    %0 = vector.load %arg1[%c0, %c0_0] : memref<2x64xf32, #tpu.memory_space<vmem>>, vector<2x64xf32>
    %c0_1 = arith.constant 0 : index
    %c0_2 = arith.constant 0 : index
    %1 = vector.load %arg2[%c0_1, %c0_2] : memref<64x32xf32, #tpu.memory_space<vmem>>, vector<64x32xf32>
    %cst = arith.constant dense<0.000000e+00> : vector<2x32xf32>
    %2 = tpu.matmul %0, %1, %cst {dimension_numbers = #tpu.dot_dimension_numbers<[1], [0], [0], [1], [0, 0, 1, 1], [], []>} : vector<2x64xf32>, vector<64x32xf32>, vector<2x32xf32> -> vector<2x32xf32>
    %c0_3 = arith.constant 0 : index
    %c0_4 = arith.constant 0 : index
    %3 = vector.load %arg3[%c0_3, %c0_4] : memref<1x32xf32, #tpu.memory_space<vmem>>, vector<1x32xf32>
    %4 = vector.broadcast %3 : vector<1x32xf32> to vector<2x32xf32>
    %5 = arith.addf %2, %4 : vector<2x32xf32>
    %cst_5 = arith.constant 0.000000e+00 : f32
    %6 = vector.broadcast %cst_5 : f32 to vector<2x32xf32>
    %7 = arith.maximumf %5, %6 : vector<2x32xf32>
    %c0_6 = arith.constant 0 : index
    %c0_7 = arith.constant 0 : index
    %8 = vector.load %arg4[%c0_6, %c0_7] : memref<32x5xf32, #tpu.memory_space<vmem>>, vector<32x5xf32>
    %cst_8 = arith.constant dense<0.000000e+00> : vector<2x5xf32>
    %9 = tpu.matmul %7, %8, %cst_8 {dimension_numbers = #tpu.dot_dimension_numbers<[1], [0], [0], [1], [0, 0, 1, 1], [], []>} : vector<2x32xf32>, vector<32x5xf32>, vector<2x5xf32> -> vector<2x5xf32>
    %c0_9 = arith.constant 0 : index
    %c0_10 = arith.constant 0 : index
    %10 = vector.load %arg5[%c0_9, %c0_10] : memref<1x5xf32, #tpu.memory_space<vmem>>, vector<1x5xf32>
    %11 = vector.broadcast %10 : vector<1x5xf32> to vector<2x5xf32>
    %12 = arith.addf %9, %11 : vector<2x5xf32>
    %c0_11 = arith.constant 0 : index
    %c0_12 = arith.constant 0 : index
    %13 = vector.load %arg6[%c0_11, %c0_12] : memref<2x5xf32, #tpu.memory_space<vmem>>, vector<2x5xf32>
    tpu.vector_store %arg6[%c0_11, %c0_12], %12 {strides = array<i32>} : memref<2x5xf32, #tpu.memory_space<vmem>>, vector<2x5xf32>,
    return
  }
  func.func @transform_0(%arg0: i32) -> (i32, i32) {
    %c0_i32 = arith.constant 0 : i32
    %c0_i32_0 = arith.constant 0 : i32
    return %arg0, %c0_i32 : i32, i32
  }
  func.func @transform_1(%arg0: i32) -> (i32, i32) {
    %c0_i32 = arith.constant 0 : i32
    %c0_i32_0 = arith.constant 0 : i32
    %c0_i32_1 = arith.constant 0 : i32
    return %c0_i32, %c0_i32_0 : i32, i32
  }
  func.func @transform_2(%arg0: i32) -> (i32, i32) {
    %c0_i32 = arith.constant 0 : i32
    %c0_i32_0 = arith.constant 0 : i32
    %c0_i32_1 = arith.constant 0 : i32
    return %c0_i32, %c0_i32_0 : i32, i32
  }
  func.func @transform_3(%arg0: i32) -> (i32, i32) {
    %c0_i32 = arith.constant 0 : i32
    %c0_i32_0 = arith.constant 0 : i32
    %c0_i32_1 = arith.constant 0 : i32
    return %c0_i32, %c0_i32_0 : i32, i32
  }
  func.func @transform_4(%arg0: i32) -> (i32, i32) {
    %c0_i32 = arith.constant 0 : i32
    %c0_i32_0 = arith.constant 0 : i32
    %c0_i32_1 = arith.constant 0 : i32
    return %c0_i32, %c0_i32_0 : i32, i32
  }
  func.func @transform_5(%arg0: i32) -> (i32, i32) {
    %c0_i32 = arith.constant 0 : i32
    %c0_i32_0 = arith.constant 0 : i32
    return %arg0, %c0_i32 : i32, i32
  }
}

</mosaic_0001>

<llo_original>
// kernel: eeg_classifier_forward.1
$region0: #{eeg_classifier_forward.1}
  #allocation0 [shape = 'u32[]', space=smem, size = 0x4, offset = 0x4, fixed_abs, tag = 'smem constant byte address 0x4 - core index']
  #allocation1 [shape = 'u32[144,128]{1,0:T(1,128)}', space=vmem, size = 0x12000, scoped, tag = 'internal scratch']
  %s0 = inlined_call_operand.vmem [shape: f32[2,64], index: 0, kind: input, shape index: {}]
  %s1 = inlined_call_operand.vmem [shape: f32[64,32], index: 1, kind: input, shape index: {}]
  %s2 = inlined_call_operand.vmem [shape: f32[1,32], index: 2, kind: input, shape index: {}]
  %s3 = inlined_call_operand.vmem [shape: f32[32,5], index: 3, kind: input, shape index: {}]
  %s4 = inlined_call_operand.vmem [shape: f32[1,5], index: 4, kind: input, shape index: {}]
  %s5 = inlined_call_operand.hbm [shape: f32[2,5], index: 5, kind: output, shape index: {}]
  %s6 = sld [smem:[#allocation0]]
  $region30: #{eeg_classifier_forward.1} parent=0
    _
  %s8 = ssub.s32 1, %s6
  %s9 = scalar_select 0, %s8, %s6
  $region1: #{eeg_classifier_forward.1} parent=0
    #allocation2 [shape = 'u8[1024]{0}', space=vmem, size = 0x400, scoped, tag = 'output window, operand 0, single buffered']
    #allocation3 [shape = 's32[1]{0}', space=sflag, size = 0x4, scoped, tag = 'scoped memory for eeg_classifier_forward.1']
    %10 = vsyncpa [#allocation3], 0
    // Predicated region
    $region2: #{eeg_classifier_forward.1} parent=1 // pred_check
      _
    $region3: #{eeg_classifier_forward.1} parent=1 // pred_check_branch
      %12 = sbr.rel (0) target = $region5
    $region4: #{eeg_classifier_forward.1} parent=1 // pred_region
      _
    $region5: #{eeg_classifier_forward.1} parent=1 // pred_fallthru
      _
    // Predicated region
    $region6: #{eeg_classifier_forward.1} parent=1 // pred_check
      _
    $region7: #{eeg_classifier_forward.1} parent=1 // pred_check_branch
      %14 = sbr.rel (0) target = $region9
    $region8: #{eeg_classifier_forward.1} parent=1 // pred_region
      _
    $region9: #{eeg_classifier_forward.1} parent=1 // pred_fallthru
      _
    // Predicated region
    $region10: #{eeg_classifier_forward.1} parent=1 // pred_check
      _
    $region11: #{eeg_classifier_forward.1} parent=1 // pred_check_branch
      %16 = sbr.rel (0) target = $region13
    $region12: #{eeg_classifier_forward.1} parent=1 // pred_region
      _
    $region13: #{eeg_classifier_forward.1} parent=1 // pred_fallthru
      _
    // Predicated region
    $region14: #{eeg_classifier_forward.1} parent=1 // pred_check
      _
    $region15: #{eeg_classifier_forward.1} parent=1 // pred_check_branch
      %18 = sbr.rel (0) target = $region17
    $region16: #{eeg_classifier_forward.1} parent=1 // pred_region
      _
    $region17: #{eeg_classifier_forward.1} parent=1 // pred_fallthru
      _
    // Predicated region
    $region18: #{eeg_classifier_forward.1} parent=1 // pred_check
      _
    $region19: #{eeg_classifier_forward.1} parent=1 // pred_check_branch
      %20 = sbr.rel (0) target = $region21
    $region20: #{eeg_classifier_forward.1} parent=1 // pred_region
      _
    $region21: #{eeg_classifier_forward.1} parent=1 // pred_fallthru
      _
    %v21 = vld [vmem:[%s0] sm:$0x3]
    %v22 = vld [vmem:[%s1] sm:$0xff]
    %v23 = vld [vmem:[%s1 + $0x8] sm:$0xff]
    %v24 = vld [vmem:[%s1 + $0x10] sm:$0xff]
    %v25 = vld [vmem:[%s1 + $0x18] sm:$0xff]
    %v26 = vld [vmem:[%s1 + $0x20] sm:$0xff]
    %v27 = vld [vmem:[%s1 + $0x28] sm:$0xff]
    %v28 = vld [vmem:[%s1 + $0x30] sm:$0xff]
    %v29 = vld [vmem:[%s1 + $0x38] sm:$0xff]
    %v30 = vld [vmem:[%s2] sm:$0x1]
    %v32 = vlaneseq
    %v33 = vshrl.u32 %v32, 7
    %v34 = vsub.s32 0, %v33
    %v35 = vrot.slane %v30, %v34
    %vm37 = vcmask 523264
    %v39 = vsel %vm37, %v21, 0
    %41 = vmatprep.subr.mxu0 0.0
    %42 = vmatpush1.msra.mxu0 0.0
    %43 = vmatprep.subr.mxu0 0.0
    %44 = vmatpush1.msra.mxu0 0.0
    %45 = vmatprep.subr.mxu0 0.0
    %46 = vmatpush1.msra.mxu0 0.0
    %47 = vmatprep.subr.mxu0 0.0
    %48 = vmatpush1.msra.mxu0 0.0
    %49 = vmatprep.subr.mxu0 0.0
    %50 = vmatpush1.msra.mxu0 0.0
    %51 = vmatprep.subr.mxu0 0.0
    %52 = vmatpush1.msra.mxu0 0.0
    %53 = vmatprep.subr.mxu0 0.0
    %54 = vmatpush1.msra.mxu0 0.0
    %55 = vmatprep.subr.mxu0 0.0
    %56 = vmatpush1.msra.mxu0 0.0
    %57 = vmatprep.subr.mxu0 0.0
    %58 = vmatpush1.msra.mxu0 %v29
    %59 = vmatprep.subr.mxu0 0.0
    %60 = vmatpush1.msra.mxu0 %v28
    %61 = vmatprep.subr.mxu0 0.0
    %62 = vmatpush1.msra.mxu0 %v27
    %63 = vmatprep.subr.mxu0 0.0
    %64 = vmatpush1.msra.mxu0 %v26
    %65 = vmatprep.subr.mxu0 0.0
    %66 = vmatpush1.msra.mxu0 %v25
    %67 = vmatprep.subr.mxu0 0.0
    %68 = vmatpush1.msra.mxu0 %v24
    %69 = vmatprep.subr.mxu0 0.0
    %70 = vmatpush1.msra.mxu0 %v23
    %71 = vmatprep.subr.mxu0 0.0
    %72 = vmatpush1.msra.mxu0 %v22
    %73 = vmatprep.subr.mxu0 0.0
    %74 = vmatpush2.msra.mxu0 0.0
    %75 = vmatprep.subr.mxu0 0.0
    %76 = vmatpush2.msra.mxu0 0.0
    %77 = vmatprep.subr.mxu0 0.0
    %78 = vmatpush2.msra.mxu0 0.0
    %79 = vmatprep.subr.mxu0 0.0
    %80 = vmatpush2.msra.mxu0 0.0
    %81 = vmatprep.subr.mxu0 0.0
    %82 = vmatpush2.msra.mxu0 0.0
    %83 = vmatprep.subr.mxu0 0.0
    %84 = vmatpush2.msra.mxu0 0.0
    %85 = vmatprep.subr.mxu0 0.0
    %86 = vmatpush2.msra.mxu0 0.0
    %87 = vmatprep.subr.mxu0 0.0
    %88 = vmatpush2.msra.mxu0 0.0
    %89 = vmatprep.subr.mxu0 0.0
    %90 = vmatpush2.msra.mxu0 0.0
    %91 = vmatprep.subr.mxu0 0.0
    %92 = vmatpush2.msra.mxu0 0.0
    %93 = vmatprep.subr.mxu0 0.0
    %94 = vmatpush2.msra.mxu0 0.0
    %95 = vmatprep.subr.mxu0 0.0
    %96 = vmatpush2.msra.mxu0 0.0
    %97 = vmatprep.subr.mxu0 0.0
    %98 = vmatpush2.msra.mxu0 0.0
    %99 = vmatprep.subr.mxu0 0.0
    %100 = vmatpush2.msra.mxu0 0.0
    %101 = vmatprep.subr.mxu0 0.0
    %102 = vmatpush2.msra.mxu0 0.0
    %103 = vmatprep.subr.mxu0 0.0
    %104 = vmatpush2.msra.mxu0 0.0
    %105 = vmatprep.mubr.f32.mxu0 0.0
    %106 = vmatmul.mubr.f32.gmra.mxu0 %v39
    %v107 = vpop.f32.mrf.mxu0
    %v108 = vadd.f32 %v35, %v107
    %v109 = vpop.f32.mrf.mxu0
    %110 = vdwg.mxu0
    %v111 = vmax.f32 %v108, 0.0
    %v112 = vld [vmem:[%s3] sm:$0xff]
    %v113 = vld [vmem:[%s3 + $0x8] sm:$0xff]
    %v114 = vld [vmem:[%s3 + $0x10] sm:$0xff]
    %v115 = vld [vmem:[%s3 + $0x18] sm:$0xff]
    %v116 = vld [vmem:[%s4] sm:$0x1]
    %v118 = vlaneseq
    %v119 = vshrl.u32 %v118, 7
    %v120 = vsub.s32 0, %v119
    %v121 = vrot.slane %v116, %v120
    %vm123 = vcmask 261120
    %v125 = vsel %vm123, %v111, 0
    %127 = vmatprep.subr.mxu0 0.0
    %128 = vmatpush1.msra.mxu0 0.0
    %129 = vmatprep.subr.mxu0 0.0
    %130 = vmatpush1.msra.mxu0 0.0
    %131 = vmatprep.subr.mxu0 0.0
    %132 = vmatpush1.msra.mxu0 0.0
    %133 = vmatprep.subr.mxu0 0.0
    %134 = vmatpush1.msra.mxu0 0.0
    %135 = vmatprep.subr.mxu0 0.0
    %136 = vmatpush1.msra.mxu0 0.0
    %137 = vmatprep.subr.mxu0 0.0
    %138 = vmatpush1.msra.mxu0 0.0
    %139 = vmatprep.subr.mxu0 0.0
    %140 = vmatpush1.msra.mxu0 0.0
    %141 = vmatprep.subr.mxu0 0.0
    %142 = vmatpush1.msra.mxu0 0.0
    %143 = vmatprep.subr.mxu0 0.0
    %144 = vmatpush1.msra.mxu0 0.0
    %145 = vmatprep.subr.mxu0 0.0
    %146 = vmatpush1.msra.mxu0 0.0
    %147 = vmatprep.subr.mxu0 0.0
    %148 = vmatpush1.msra.mxu0 0.0
    %149 = vmatprep.subr.mxu0 0.0
    %150 = vmatpush1.msra.mxu0 0.0
    %151 = vmatprep.subr.mxu0 0.0
    %152 = vmatpush1.msra.mxu0 %v115
    %153 = vmatprep.subr.mxu0 0.0
    %154 = vmatpush1.msra.mxu0 %v114
    %155 = vmatprep.subr.mxu0 0.0
    %156 = vmatpush1.msra.mxu0 %v113
    %157 = vmatprep.subr.mxu0 0.0
    %158 = vmatpush1.msra.mxu0 %v112
    %159 = vmatprep.subr.mxu0 0.0
    %160 = vmatpush2.msra.mxu0 0.0
    %161 = vmatprep.subr.mxu0 0.0
    %162 = vmatpush2.msra.mxu0 0.0
    %163 = vmatprep.subr.mxu0 0.0
    %164 = vmatpush2.msra.mxu0 0.0
    %165 = vmatprep.subr.mxu0 0.0
    %166 = vmatpush2.msra.mxu0 0.0
    %167 = vmatprep.subr.mxu0 0.0
    %168 = vmatpush2.msra.mxu0 0.0
    %169 = vmatprep.subr.mxu0 0.0
    %170 = vmatpush2.msra.mxu0 0.0
    %171 = vmatprep.subr.mxu0 0.0
    %172 = vmatpush2.msra.mxu0 0.0
    %173 = vmatprep.subr.mxu0 0.0
    %174 = vmatpush2.msra.mxu0 0.0
    %175 = vmatprep.subr.mxu0 0.0
    %176 = vmatpush2.msra.mxu0 0.0
    %177 = vmatprep.subr.mxu0 0.0
    %178 = vmatpush2.msra.mxu0 0.0
    %179 = vmatprep.subr.mxu0 0.0
    %180 = vmatpush2.msra.mxu0 0.0
    %181 = vmatprep.subr.mxu0 0.0
    %182 = vmatpush2.msra.mxu0 0.0
    %183 = vmatprep.subr.mxu0 0.0
    %184 = vmatpush2.msra.mxu0 0.0
    %185 = vmatprep.subr.mxu0 0.0
    %186 = vmatpush2.msra.mxu0 0.0
    %187 = vmatprep.subr.mxu0 0.0
    %188 = vmatpush2.msra.mxu0 0.0
    %189 = vmatprep.subr.mxu0 0.0
    %190 = vmatpush2.msra.mxu0 0.0
    %191 = vmatprep.mubr.f32.mxu0 0.0
    %192 = vmatmul.mubr.f32.gmra.mxu0 %v125
    %v193 = vpop.f32.mrf.mxu0
    %v194 = vadd.f32 %v121, %v193
    %v195 = vpop.f32.mrf.mxu0
    %196 = vdwg.mxu0
    %vm197 = vcmask 33792
    %198 = vst.msk [vmem:[#allocation2] sm:$0x3] %vm197, %v194
    // Predicated region
    $region22: #{eeg_classifier_forward.1} parent=1 // pred_check
      _
    $region23: #{eeg_classifier_forward.1} parent=1 // pred_check_branch
      %200 = sbr.rel (0) target = $region25
    $region24: #{eeg_classifier_forward.1} parent=1 // pred_region
      %s202 = ssub.s32 32, 32
      %203 = vsyncadd [#allocation3], %s202
      %s205 = sshll.u32 [#allocation2], 4
      %s206 = int_to_ptr.vmem [resolvable:$true] %s205
      %208 = dma.vmem_to_hbm [thread:$0]  %s206, 32, %s5, [#allocation3]
    $region25: #{eeg_classifier_forward.1} parent=1 // pred_fallthru
      _
    // Predicated region
    $region26: #{eeg_classifier_forward.1} parent=1 // pred_check
      _
    $region27: #{eeg_classifier_forward.1} parent=1 // pred_check_branch
      %210 = sbr.rel (0) target = $region29
    $region28: #{eeg_classifier_forward.1} parent=1 // pred_region
      %211 = dma.done [#allocation3], 32
    $region29: #{eeg_classifier_forward.1} parent=1 // pred_fallthru
      _
    %212 = vsyncpa [#allocation3], 1

</llo_original>
